<compile_context>
chip_gen: v7x
topology: tpu7x:2x2x1
jax: 0.10.0
libtpu: 0.0.40
codegen_flags: <defaults>
</compile_context>

<pallas_src>
import jax
import jax.numpy as jnp
from jax.experimental import pallas as pl
from jax.experimental.pallas import tpu as pltpu


def _round_up(n, m):
    return ((n + m - 1) // m) * m


def _cdiv(a, b):
    return (a + b - 1) // b


def _mlp_kernel(x_ref, w1_ref, b1_ref, w2_ref, b2_ref, w3_ref, b3_ref, o_ref):
    x = x_ref[...]                                           # (TB, D_in)

    # Layer 1: D_in -> 128 on the MXU, f32 accumulation; bias + ReLU in f32.
    h1 = jnp.dot(x, w1_ref[...], preferred_element_type=jnp.float32)
    h1 = jnp.maximum(h1 + b1_ref[...], 0.0)

    # Layer 2: 128 -> 64 on the MXU.
    h2 = jnp.dot(h1, w2_ref[...], preferred_element_type=jnp.float32)
    h2 = jnp.maximum(h2 + b2_ref[...], 0.0)

    # Layer 3: 64 -> 1. Keep it off the MXU: VPU multiply + XLU lane reduce.
    out_col = jnp.sum(h2 * w3_ref[...], axis=-1, keepdims=True) + b3_ref[...]  # (TB, 1)

    # Lane-dense store: relayout the column into the (TB//128, 128) out block.
    o_ref[...] = out_col.reshape(o_ref.shape).astype(o_ref.dtype)


def interatomic_potential_nn(x, w1, b1, w2, b2, w3, b3, *, block_rows=8192):
    """Fused MLP forward.

    x : (B, D_in) f32 (or bf16 if the producer already emits bf16)
    w1: (D_in, 128), b1: (1, 128) or (128,)
    w2: (128, 64),   b2: (1, 64)  or (64,)
    w3: (64, 1),     b3: (1, 1)   or (1,)
    returns (B, 1) f32
    """
    B, d_in = x.shape

    # Weights / biases are tiny and VMEM-resident. Math stays f32; only follow
    # x's dtype for the layer-1 MXU operands if it is already bf16 (never add
    # a standalone wrapper-side cast of x -- it would double HBM traffic).
    w_dtype = jnp.bfloat16 if x.dtype == jnp.bfloat16 else jnp.float32
    w1c = w1.astype(w_dtype)
    w2f = w2.astype(jnp.float32)
    w3_row = w3.reshape(1, -1).astype(jnp.float32)            # (1, 64)
    b1f = b1.reshape(1, -1).astype(jnp.float32)
    b2f = b2.reshape(1, -1).astype(jnp.float32)
    b3f = b3.reshape(1, 1).astype(jnp.float32)

    # ---- Row-tile selection (in units of 128-row lane groups). ----
    b_lanes = _cdiv(B, 128)                                   # output rows
    d_lanes = _round_up(d_in, 128)
    # Rough per-row VMEM: double-buffered lane-padded x block + f32 temps.
    bytes_per_row = 2 * d_lanes * x.dtype.itemsize + 3 * 128 * 4
    vmem_budget = 24 * 1024 * 1024                            # fits v7x scoped VMEM
    max_rows = max(1024, vmem_budget // bytes_per_row)

    tb_rows = min(block_rows, max_rows) // 128
    tb_rows = max(8, (tb_rows // 8) * 8)                      # (8,128)-legal tiles
    # Megacore: keep >= 2 grid steps when each half tile is still >= 1024 rows.
    half = _round_up(_cdiv(b_lanes, 2), 8)
    if half * 128 >= 1024:
        tb_rows = min(tb_rows, half)
    if tb_rows >= b_lanes:
        tb_rows = b_lanes                                     # one block spans all
    tb = tb_rows * 128
    grid = (_cdiv(b_lanes, tb_rows),)                         # == cdiv(B, tb)

    def resident(arr):
        # Whole array as one block, constant block index -> stays in VMEM.
        return pl.BlockSpec(arr.shape, lambda i: (0,) * arr.ndim)

    flops = 2 * B * (d_in * 128 + 128 * 64 + 64)
    bytes_accessed = (
        B * d_in * x.dtype.itemsize + B * 4                   # x in, result out
        + w1c.size * w1c.dtype.itemsize
        + (w2f.size + w3_row.size + b1f.size + b2f.size + b3f.size) * 4)

    out2d = pl.pallas_call(
        _mlp_kernel,
        out_shape=jax.ShapeDtypeStruct((b_lanes, 128), jnp.float32),
        grid=grid,
        in_specs=[
            pl.BlockSpec((tb, d_in), lambda i: (i, 0)),       # x: batch-tiled
            resident(w1c), resident(b1f),
            resident(w2f), resident(b2f),
            resident(w3_row), resident(b3f),
        ],
        out_specs=pl.BlockSpec((tb_rows, 128), lambda i: (i, 0)),
        compiler_params=pltpu.CompilerParams(
            dimension_semantics=("parallel",),
            vmem_limit_bytes=48 * 1024 * 1024,
        ),
        cost_estimate=pl.CostEstimate(
            flops=flops, transcendentals=0, bytes_accessed=bytes_accessed),
    )(x, w1c, b1f, w2f, b2f, w3_row, b3f)

    # Undo the lane-dense packing: (ceil(B/128), 128) -> (B, 1).
    return out2d.reshape(-1)[:B].reshape(B, 1)


def init_params(key, input_dim):
    """Deterministic PyTorch-style (Kaiming-uniform-ish) init for the 3 Linears.

    Weights stored as (D_in, D_out) = transpose of nn.Linear's (out, in).
    """
    dims = [(input_dim, 128), (128, 64), (64, 1)]
    params = []
    for (din, dout) in dims:
        key, kw, kb = jax.random.split(key, 3)
        bound = 1.0 / jnp.sqrt(float(din))
        w = jax.random.uniform(kw, (din, dout), jnp.float32, -bound, bound)
        b = jax.random.uniform(kb, (1, dout), jnp.float32, -bound, bound)
        params.extend([w, b])
    return params


def _reference(x, w1, b1, w2, b2, w3, b3):
    prec = jax.lax.Precision.HIGHEST
    h1 = jnp.maximum(jnp.dot(x, w1, precision=prec) + b1, 0.0)
    h2 = jnp.maximum(jnp.dot(h1, w2, precision=prec) + b2, 0.0)
    return jnp.dot(h2, w3, precision=prec) + b3


if __name__ == "__main__":
    key = jax.random.PRNGKey(0)
    key, kx = jax.random.split(key)

    B, input_dim = 8, 32
    x = jax.random.normal(kx, (B, input_dim), dtype=jnp.float32)
    w1, b1, w2, b2, w3, b3 = init_params(key, input_dim)

    out = jax.block_until_ready(
        interatomic_potential_nn(x, w1, b1, w2, b2, w3, b3))
    ref = _reference(x, w1, b1, w2, b2, w3, b3)
    assert out.shape == (B, 1)
    assert jnp.allclose(out, ref, atol=1e-3, rtol=1e-3), (
        f"max abs err {jnp.max(jnp.abs(out - ref))}")

    # Exercise a multi-step grid with an edge block (B not a tile multiple).
    B2 = 2000
    key, kx2 = jax.random.split(key)
    x2 = jax.random.normal(kx2, (B2, input_dim), dtype=jnp.float32)
    out2 = jax.block_until_ready(
        interatomic_potential_nn(x2, w1, b1, w2, b2, w3, b3))
    ref2 = _reference(x2, w1, b1, w2, b2, w3, b3)
    assert out2.shape == (B2, 1)
    assert jnp.allclose(out2, ref2, atol=1e-3, rtol=1e-3), (
        f"max abs err {jnp.max(jnp.abs(out2 - ref2))}")

    print("KERNEL_OK")
</pallas_src>

<mosaic_0001>
module attributes {stable_mosaic.version = 11 : i64} {
  func.func @_mlp_kernel(%arg0: i32, %arg1: memref<128x32xf32, #tpu.memory_space<vmem>>, %arg2: memref<32x128xf32, #tpu.memory_space<vmem>>, %arg3: memref<1x128xf32, #tpu.memory_space<vmem>>, %arg4: memref<128x64xf32, #tpu.memory_space<vmem>>, %arg5: memref<1x64xf32, #tpu.memory_space<vmem>>, %arg6: memref<1x64xf32, #tpu.memory_space<vmem>>, %arg7: memref<1x1xf32, #tpu.memory_space<vmem>>, %arg8: memref<1x128xf32, #tpu.memory_space<vmem>>) attributes {dimension_semantics = [#tpu.dimension_semantics<parallel>], iteration_bounds = array<i64: 1>, scalar_prefetch = 0 : i64, scratch_operands = 0 : i64, tpu.core_type = #tpu.core_type<tc>, window_params = [{transform_indices = @transform_0, window_bounds = array<i64: 128, 32>}, {pipeline_mode = #tpu.pipeline_mode<synchronous>, transform_indices = @transform_1, window_bounds = array<i64: 32, 128>}, {pipeline_mode = #tpu.pipeline_mode<synchronous>, transform_indices = @transform_2, window_bounds = array<i64: 1, 128>}, {pipeline_mode = #tpu.pipeline_mode<synchronous>, transform_indices = @transform_3, window_bounds = array<i64: 128, 64>}, {pipeline_mode = #tpu.pipeline_mode<synchronous>, transform_indices = @transform_4, window_bounds = array<i64: 1, 64>}, {pipeline_mode = #tpu.pipeline_mode<synchronous>, transform_indices = @transform_5, window_bounds = array<i64: 1, 64>}, {pipeline_mode = #tpu.pipeline_mode<synchronous>, transform_indices = @transform_6, window_bounds = array<i64: 1, 1>}, {transform_indices = @transform_7, window_bounds = array<i64: 1, 128>}]} {
    %c0 = arith.constant 0 : index
    %c0_0 = arith.constant 0 : index
    %0 = vector.load %arg1[%c0, %c0_0] : memref<128x32xf32, #tpu.memory_space<vmem>>, vector<128x32xf32>
    %c0_1 = arith.constant 0 : index
    %c0_2 = arith.constant 0 : index
    %1 = vector.load %arg2[%c0_1, %c0_2] : memref<32x128xf32, #tpu.memory_space<vmem>>, vector<32x128xf32>
    %cst = arith.constant dense<0.000000e+00> : vector<128x128xf32>
    %2 = tpu.matmul %0, %1, %cst {dimension_numbers = #tpu.dot_dimension_numbers<[1], [0], [0], [1], [0, 0, 1, 1], [], []>} : vector<128x32xf32>, vector<32x128xf32>, vector<128x128xf32> -> vector<128x128xf32>
    %c0_3 = arith.constant 0 : index
    %c0_4 = arith.constant 0 : index
    %3 = vector.load %arg3[%c0_3, %c0_4] : memref<1x128xf32, #tpu.memory_space<vmem>>, vector<1x128xf32>
    %4 = vector.broadcast %3 : vector<1x128xf32> to vector<128x128xf32>
    %5 = arith.addf %2, %4 : vector<128x128xf32>
    %cst_5 = arith.constant 0.000000e+00 : f32
    %6 = vector.broadcast %cst_5 : f32 to vector<128x128xf32>
    %7 = arith.maximumf %5, %6 : vector<128x128xf32>
    %c0_6 = arith.constant 0 : index
    %c0_7 = arith.constant 0 : index
    %8 = vector.load %arg4[%c0_6, %c0_7] : memref<128x64xf32, #tpu.memory_space<vmem>>, vector<128x64xf32>
    %cst_8 = arith.constant dense<0.000000e+00> : vector<128x64xf32>
    %9 = tpu.matmul %7, %8, %cst_8 {dimension_numbers = #tpu.dot_dimension_numbers<[1], [0], [0], [1], [0, 0, 1, 1], [], []>} : vector<128x128xf32>, vector<128x64xf32>, vector<128x64xf32> -> vector<128x64xf32>
    %c0_9 = arith.constant 0 : index
    %c0_10 = arith.constant 0 : index
    %10 = vector.load %arg5[%c0_9, %c0_10] : memref<1x64xf32, #tpu.memory_space<vmem>>, vector<1x64xf32>
    %11 = vector.broadcast %10 : vector<1x64xf32> to vector<128x64xf32>
    %12 = arith.addf %9, %11 : vector<128x64xf32>
    %cst_11 = arith.constant 0.000000e+00 : f32
    %13 = vector.broadcast %cst_11 : f32 to vector<128x64xf32>
    %14 = arith.maximumf %12, %13 : vector<128x64xf32>
    %c0_12 = arith.constant 0 : index
    %c0_13 = arith.constant 0 : index
    %15 = vector.load %arg6[%c0_12, %c0_13] : memref<1x64xf32, #tpu.memory_space<vmem>>, vector<1x64xf32>
    %16 = vector.broadcast %15 : vector<1x64xf32> to vector<128x64xf32>
    %17 = arith.mulf %14, %16 : vector<128x64xf32>
    %cst_14 = arith.constant dense<0.000000e+00> : vector<128xf32>
    %18 = vector.multi_reduction <add>, %17, %cst_14 [1] : vector<128x64xf32> to vector<128xf32>
    %19 = vector.shape_cast %18 : vector<128xf32> to vector<128x1xf32>
    %c0_15 = arith.constant 0 : index
    %c0_16 = arith.constant 0 : index
    %20 = vector.load %arg7[%c0_15, %c0_16] : memref<1x1xf32, #tpu.memory_space<vmem>>, vector<1x1xf32>
    %21 = vector.broadcast %20 : vector<1x1xf32> to vector<128x1xf32>
    %22 = arith.addf %19, %21 : vector<128x1xf32>
    %23 = vector.shape_cast %22 : vector<128x1xf32> to vector<1x128xf32>
    %c0_17 = arith.constant 0 : index
    %c0_18 = arith.constant 0 : index
    %24 = vector.load %arg8[%c0_17, %c0_18] : memref<1x128xf32, #tpu.memory_space<vmem>>, vector<1x128xf32>
    tpu.vector_store %arg8[%c0_17, %c0_18], %23 {strides = array<i32>} : memref<1x128xf32, #tpu.memory_space<vmem>>, vector<1x128xf32>,
    return
  }
  func.func @transform_0(%arg0: i32) -> (i32, i32) {
    %c0_i32 = arith.constant 0 : i32
    %c0_i32_0 = arith.constant 0 : i32
    return %arg0, %c0_i32 : i32, i32
  }
  func.func @transform_1(%arg0: i32) -> (i32, i32) {
    %c0_i32 = arith.constant 0 : i32
    %c0_i32_0 = arith.constant 0 : i32
    %c0_i32_1 = arith.constant 0 : i32
    return %c0_i32, %c0_i32_0 : i32, i32
  }
  func.func @transform_2(%arg0: i32) -> (i32, i32) {
    %c0_i32 = arith.constant 0 : i32
    %c0_i32_0 = arith.constant 0 : i32
    %c0_i32_1 = arith.constant 0 : i32
    return %c0_i32, %c0_i32_0 : i32, i32
  }
  func.func @transform_3(%arg0: i32) -> (i32, i32) {
    %c0_i32 = arith.constant 0 : i32
    %c0_i32_0 = arith.constant 0 : i32
    %c0_i32_1 = arith.constant 0 : i32
    return %c0_i32, %c0_i32_0 : i32, i32
  }
  func.func @transform_4(%arg0: i32) -> (i32, i32) {
    %c0_i32 = arith.constant 0 : i32
    %c0_i32_0 = arith.constant 0 : i32
    %c0_i32_1 = arith.constant 0 : i32
    return %c0_i32, %c0_i32_0 : i32, i32
  }
  func.func @transform_5(%arg0: i32) -> (i32, i32) {
    %c0_i32 = arith.constant 0 : i32
    %c0_i32_0 = arith.constant 0 : i32
    %c0_i32_1 = arith.constant 0 : i32
    return %c0_i32, %c0_i32_0 : i32, i32
  }
  func.func @transform_6(%arg0: i32) -> (i32, i32) {
    %c0_i32 = arith.constant 0 : i32
    %c0_i32_0 = arith.constant 0 : i32
    %c0_i32_1 = arith.constant 0 : i32
    return %c0_i32, %c0_i32_0 : i32, i32
  }
  func.func @transform_7(%arg0: i32) -> (i32, i32) {
    %c0_i32 = arith.constant 0 : i32
    %c0_i32_0 = arith.constant 0 : i32
    return %arg0, %c0_i32 : i32, i32
  }
}

</mosaic_0001>

<llo_original>
// kernel: tpu_custom_call.1
$region0: #{tpu_custom_call.1}
  #allocation0 [shape = 'u32[]', space=smem, size = 0x4, offset = 0x4, fixed_abs, tag = 'smem constant byte address 0x4 - core index']
  #allocation1 [shape = 'u32[144,128]{1,0:T(1,128)}', space=vmem, size = 0x12000, scoped, tag = 'internal scratch']
  #allocation2 [shape = 'f32[1,1]{1,0:T(1,128)S(1)}', space=vmem, size = 0x200, scoped, tag = 'scoped memory for tpu_custom_call.1']
  %s0 = inlined_call_operand.vmem [shape: f32[8,32], index: 0, kind: input, shape index: {}]
  %s1 = inlined_call_operand.vmem [shape: f32[32,128], index: 1, kind: input, shape index: {}]
  %s2 = inlined_call_operand.vmem [shape: f32[1,128], index: 2, kind: input, shape index: {}]
  %s3 = inlined_call_operand.vmem [shape: f32[128,64], index: 3, kind: input, shape index: {}]
  %s4 = inlined_call_operand.vmem [shape: f32[1,64], index: 4, kind: input, shape index: {}]
  %s5 = inlined_call_operand.vmem [shape: f32[1,64], index: 5, kind: input, shape index: {}]
  %s6 = inlined_call_operand.<no memory space> [shape: f32[1,1], index: 6, kind: input, shape index: {}]
  %s7 = inlined_call_operand.hbm [shape: f32[1,128], index: 7, kind: output, shape index: {}]
  %s8 = sld [smem:[#allocation0]]
  $region38: #{tpu_custom_call.1} parent=0
    _
  %s10 = ssub.s32 1, %s8
  %s11 = scalar_select 0, %s10, %s8
  %v12 = vstv %s6
  %13 = vst [vmem:[#allocation2] sm:$0x1] %v12
  $region1: #{tpu_custom_call.1} parent=0
    #allocation3 [shape = 'u8[512]{0}', space=vmem, size = 0x400, scoped, tag = 'output window, operand 0, single buffered']
    #allocation4 [shape = 's32[1]{0}', space=sflag, size = 0x4, scoped, tag = 'scoped memory for tpu_custom_call.1']
    %14 = vsyncpa [#allocation4], 0
    // Predicated region
    $region2: #{tpu_custom_call.1} parent=1 // pred_check
      _
    $region3: #{tpu_custom_call.1} parent=1 // pred_check_branch
      %16 = sbr.rel (0) target = $region5
    $region4: #{tpu_custom_call.1} parent=1 // pred_region
      _
    $region5: #{tpu_custom_call.1} parent=1 // pred_fallthru
      _
    // Predicated region
    $region6: #{tpu_custom_call.1} parent=1 // pred_check
      _
    $region7: #{tpu_custom_call.1} parent=1 // pred_check_branch
      %18 = sbr.rel (0) target = $region9
    $region8: #{tpu_custom_call.1} parent=1 // pred_region
      _
    $region9: #{tpu_custom_call.1} parent=1 // pred_fallthru
      _
    // Predicated region
    $region10: #{tpu_custom_call.1} parent=1 // pred_check
      _
    $region11: #{tpu_custom_call.1} parent=1 // pred_check_branch
      %20 = sbr.rel (0) target = $region13
    $region12: #{tpu_custom_call.1} parent=1 // pred_region
      _
    $region13: #{tpu_custom_call.1} parent=1 // pred_fallthru
      _
    // Predicated region
    $region14: #{tpu_custom_call.1} parent=1 // pred_check
      _
    $region15: #{tpu_custom_call.1} parent=1 // pred_check_branch
      %22 = sbr.rel (0) target = $region17
    $region16: #{tpu_custom_call.1} parent=1 // pred_region
      _
    $region17: #{tpu_custom_call.1} parent=1 // pred_fallthru
      _
    // Predicated region
    $region18: #{tpu_custom_call.1} parent=1 // pred_check
      _
    $region19: #{tpu_custom_call.1} parent=1 // pred_check_branch
      %24 = sbr.rel (0) target = $region21
    $region20: #{tpu_custom_call.1} parent=1 // pred_region
      _
    $region21: #{tpu_custom_call.1} parent=1 // pred_fallthru
      _
    // Predicated region
    $region22: #{tpu_custom_call.1} parent=1 // pred_check
      _
    $region23: #{tpu_custom_call.1} parent=1 // pred_check_branch
      %26 = sbr.rel (0) target = $region25
    $region24: #{tpu_custom_call.1} parent=1 // pred_region
      _
    $region25: #{tpu_custom_call.1} parent=1 // pred_fallthru
      _
    // Predicated region
    $region26: #{tpu_custom_call.1} parent=1 // pred_check
      _
    $region27: #{tpu_custom_call.1} parent=1 // pred_check_branch
      %28 = sbr.rel (0) target = $region29
    $region28: #{tpu_custom_call.1} parent=1 // pred_region
      _
    $region29: #{tpu_custom_call.1} parent=1 // pred_fallthru
      _
    %v29 = vld [vmem:[%s0] sm:$0xff]
    %v30 = vld [vmem:[%s0 + $0x8] sm:$0xff]
    %v31 = vld [vmem:[%s0 + $0x10] sm:$0xff]
    %v32 = vld [vmem:[%s0 + $0x18] sm:$0xff]
    %v33 = vld [vmem:[%s0 + $0x20] sm:$0xff]
    %v34 = vld [vmem:[%s0 + $0x28] sm:$0xff]
    %v35 = vld [vmem:[%s0 + $0x30] sm:$0xff]
    %v36 = vld [vmem:[%s0 + $0x38] sm:$0xff]
    %v37 = vld [vmem:[%s0 + $0x40] sm:$0xff]
    %v38 = vld [vmem:[%s0 + $0x48] sm:$0xff]
    %v39 = vld [vmem:[%s0 + $0x50] sm:$0xff]
    %v40 = vld [vmem:[%s0 + $0x58] sm:$0xff]
    %v41 = vld [vmem:[%s0 + $0x60] sm:$0xff]
    %v42 = vld [vmem:[%s0 + $0x68] sm:$0xff]
    %v43 = vld [vmem:[%s0 + $0x70] sm:$0xff]
    %v44 = vld [vmem:[%s0 + $0x78] sm:$0xff]
    %v45 = vld [vmem:[%s1] sm:$0xff]
    %v46 = vld [vmem:[%s1 + $0x8] sm:$0xff]
    %v47 = vld [vmem:[%s1 + $0x10] sm:$0xff]
    %v48 = vld [vmem:[%s1 + $0x18] sm:$0xff]
    %v49 = vld [vmem:[%s2] sm:$0x1]
    %v51 = vlaneseq
    %v52 = vshrl.u32 %v51, 7
    %v53 = vsub.s32 0, %v52
    %v54 = vrot.slane %v49, %v53
    %vm56 = vcmask 261120
    %v58 = vsel %vm56, %v29, 0
    %v61 = vsel %vm56, %v30, 0
    %v64 = vsel %vm56, %v31, 0
    %v67 = vsel %vm56, %v32, 0
    %v70 = vsel %vm56, %v33, 0
    %v73 = vsel %vm56, %v34, 0
    %v76 = vsel %vm56, %v35, 0
    %v79 = vsel %vm56, %v36, 0
    %v82 = vsel %vm56, %v37, 0
    %v85 = vsel %vm56, %v38, 0
    %v88 = vsel %vm56, %v39, 0
    %v91 = vsel %vm56, %v40, 0
    %v94 = vsel %vm56, %v41, 0
    %v97 = vsel %vm56, %v42, 0
    %v100 = vsel %vm56, %v43, 0
    %v103 = vsel %vm56, %v44, 0
    %105 = vmatprep.subr.mxu0 0.0
    %106 = vmatpush1.msra.mxu0 %v45
    %107 = vmatprep.subr.mxu0 0.0
    %108 = vmatpush1.msra.mxu0 %v46
    %109 = vmatprep.subr.mxu0 0.0
    %110 = vmatpush1.msra.mxu0 %v47
    %111 = vmatprep.subr.mxu0 0.0
    %112 = vmatpush1.msra.mxu0 %v48
    %113 = vmatprep.subr.mxu0 0.0
    %114 = vmatpush1.msra.mxu0 0.0
    %115 = vmatprep.subr.mxu0 0.0
    %116 = vmatpush1.msra.mxu0 0.0
    %117 = vmatprep.subr.mxu0 0.0
    %118 = vmatpush1.msra.mxu0 0.0
    %119 = vmatprep.subr.mxu0 0.0
    %120 = vmatpush1.msra.mxu0 0.0
    %121 = vmatprep.subr.mxu0 0.0
    %122 = vmatpush1.msra.mxu0 0.0
    %123 = vmatprep.subr.mxu0 0.0
    %124 = vmatpush1.msra.mxu0 0.0
    %125 = vmatprep.subr.mxu0 0.0
    %126 = vmatpush1.msra.mxu0 0.0
    %127 = vmatprep.subr.mxu0 0.0
    %128 = vmatpush1.msra.mxu0 0.0
    %129 = vmatprep.subr.mxu0 0.0
    %130 = vmatpush1.msra.mxu0 0.0
    %131 = vmatprep.subr.mxu0 0.0
    %132 = vmatpush1.msra.mxu0 0.0
    %133 = vmatprep.subr.mxu0 0.0
    %134 = vmatpush1.msra.mxu0 0.0
    %135 = vmatprep.subr.mxu0 0.0
    %136 = vmatpush1.msra.mxu0 0.0
    %137 = vmatprep.subr.mxu0 0.0
    %138 = vmatpush1.msra.mxu0 0.0
    %139 = vmatprep.subr.mxu0 0.0
    %140 = vmatpush1.msra.mxu0 0.0
    %141 = vmatprep.subr.mxu0 0.0
    %142 = vmatpush1.msra.mxu0 0.0
    %143 = vmatprep.subr.mxu0 0.0
    %144 = vmatpush1.msra.mxu0 0.0
    %145 = vmatprep.subr.mxu0 0.0
    %146 = vmatpush1.msra.mxu0 0.0
    %147 = vmatprep.subr.mxu0 0.0
    %148 = vmatpush1.msra.mxu0 0.0
    %149 = vmatprep.subr.mxu0 0.0
    %150 = vmatpush1.msra.mxu0 0.0
    %151 = vmatprep.subr.mxu0 0.0
    %152 = vmatpush1.msra.mxu0 0.0
    %153 = vmatprep.subr.mxu0 0.0
    %154 = vmatpush1.msra.mxu0 0.0
    %155 = vmatprep.subr.mxu0 0.0
    %156 = vmatpush1.msra.mxu0 0.0
    %157 = vmatprep.subr.mxu0 0.0
    %158 = vmatpush1.msra.mxu0 0.0
    %159 = vmatprep.subr.mxu0 0.0
    %160 = vmatpush1.msra.mxu0 0.0
    %161 = vmatprep.subr.mxu0 0.0
    %162 = vmatpush1.msra.mxu0 0.0
    %163 = vmatprep.subr.mxu0 0.0
    %164 = vmatpush1.msra.mxu0 0.0
    %165 = vmatprep.subr.mxu0 0.0
    %166 = vmatpush1.msra.mxu0 0.0
    %167 = vmatprep.subr.mxu0 0.0
    %168 = vmatpush1.msra.mxu0 0.0
    %169 = vmatprep.mubr.f32.mxu0 0.0
    %170 = vmatmul.mubr.f32.gmra.mrb[0].mxu0 %v58
    %v171 = vpop.f32.mrb[0].mxu0
    %v172 = vadd.f32 %v54, %v171
    %v173 = vpop.f32.mrb[0].mxu0
    %174 = vmatprep.mubr.f32.mxu0 0.0
    %175 = vmatmul.mubr.f32.gmra.mrb[0].mxu0 %v61
    %v176 = vpop.f32.mrb[0].mxu0
    %v177 = vadd.f32 %v54, %v176
    %v178 = vpop.f32.mrb[0].mxu0
    %179 = vmatprep.mubr.f32.mxu0 0.0
    %180 = vmatmul.mubr.f32.gmra.mrb[0].mxu0 %v64
    %v181 = vpop.f32.mrb[0].mxu0
    %v182 = vadd.f32 %v54, %v181
    %v183 = vpop.f32.mrb[0].mxu0
    %184 = vmatprep.mubr.f32.mxu0 0.0
    %185 = vmatmul.mubr.f32.gmra.mrb[0].mxu0 %v67
    %v186 = vpop.f32.mrb[0].mxu0
    %v187 = vadd.f32 %v54, %v186
    %v188 = vpop.f32.mrb[0].mxu0
    %189 = vmatprep.mubr.f32.mxu0 0.0
    %190 = vmatmul.mubr.f32.gmra.mrb[0].mxu0 %v70
    %v191 = vpop.f32.mrb[0].mxu0
    %v192 = vadd.f32 %v54, %v191
    %v193 = vpop.f32.mrb[0].mxu0
    %194 = vmatprep.mubr.f32.mxu0 0.0
    %195 = vmatmul.mubr.f32.gmra.mrb[0].mxu0 %v73
    %v196 = vpop.f32.mrb[0].mxu0
    %v197 = vadd.f32 %v54, %v196
    %v198 = vpop.f32.mrb[0].mxu0
    %199 = vmatprep.mubr.f32.mxu0 0.0
    %200 = vmatmul.mubr.f32.gmra.mrb[0].mxu0 %v76
    %v201 = vpop.f32.mrb[0].mxu0
    %v202 = vadd.f32 %v54, %v201
    %v203 = vpop.f32.mrb[0].mxu0
    %204 = vmatprep.mubr.f32.mxu0 0.0
    %205 = vmatmul.mubr.f32.gmra.mrb[0].mxu0 %v79
    %v206 = vpop.f32.mrb[0].mxu0
    %v207 = vadd.f32 %v54, %v206
    %v208 = vpop.f32.mrb[0].mxu0
    %209 = vmatprep.mubr.f32.mxu0 0.0
    %210 = vmatmul.mubr.f32.gmra.mrb[0].mxu0 %v82
    %v211 = vpop.f32.mrb[0].mxu0
    %v212 = vadd.f32 %v54, %v211
    %v213 = vpop.f32.mrb[0].mxu0
    %214 = vmatprep.mubr.f32.mxu0 0.0
    %215 = vmatmul.mubr.f32.gmra.mrb[0].mxu0 %v85
    %v216 = vpop.f32.mrb[0].mxu0
    %v217 = vadd.f32 %v54, %v216
    %v218 = vpop.f32.mrb[0].mxu0
    %219 = vmatprep.mubr.f32.mxu0 0.0
    %220 = vmatmul.mubr.f32.gmra.mrb[0].mxu0 %v88
    %v221 = vpop.f32.mrb[0].mxu0
    %v222 = vadd.f32 %v54, %v221
    %v223 = vpop.f32.mrb[0].mxu0
    %224 = vmatprep.mubr.f32.mxu0 0.0
    %225 = vmatmul.mubr.f32.gmra.mrb[0].mxu0 %v91
    %v226 = vpop.f32.mrb[0].mxu0
    %v227 = vadd.f32 %v54, %v226
    %v228 = vpop.f32.mrb[0].mxu0
    %229 = vmatprep.mubr.f32.mxu0 0.0
    %230 = vmatmul.mubr.f32.gmra.mrb[0].mxu0 %v94
    %v231 = vpop.f32.mrb[0].mxu0
    %v232 = vadd.f32 %v54, %v231
    %v233 = vpop.f32.mrb[0].mxu0
    %234 = vmatprep.mubr.f32.mxu0 0.0
    %235 = vmatmul.mubr.f32.gmra.mrb[0].mxu0 %v97
    %v236 = vpop.f32.mrb[0].mxu0
    %v237 = vadd.f32 %v54, %v236
    %v238 = vpop.f32.mrb[0].mxu0
    %239 = vmatprep.mubr.f32.mxu0 0.0
    %240 = vmatmul.mubr.f32.gmra.mrb[0].mxu0 %v100
    %v241 = vpop.f32.mrb[0].mxu0
    %v242 = vadd.f32 %v54, %v241
    %v243 = vpop.f32.mrb[0].mxu0
    %244 = vmatprep.mubr.f32.mxu0 0.0
    %245 = vmatmul.mubr.f32.gmra.mrb[0].mxu0 %v103
    %v246 = vpop.f32.mrb[0].mxu0
    %v247 = vadd.f32 %v54, %v246
    %v248 = vpop.f32.mrb[0].mxu0
    %249 = vdwg.mxu0
    %v250 = vmax.f32 %v172, 0.0
    %v251 = vmax.f32 %v177, 0.0
    %v252 = vmax.f32 %v182, 0.0
    %v253 = vmax.f32 %v187, 0.0
    %v254 = vmax.f32 %v192, 0.0
    %v255 = vmax.f32 %v197, 0.0
    %v256 = vmax.f32 %v202, 0.0
    %v257 = vmax.f32 %v207, 0.0
    %v258 = vmax.f32 %v212, 0.0
    %v259 = vmax.f32 %v217, 0.0
    %v260 = vmax.f32 %v222, 0.0
    %v261 = vmax.f32 %v227, 0.0
    %v262 = vmax.f32 %v232, 0.0
    %v263 = vmax.f32 %v237, 0.0
    %v264 = vmax.f32 %v242, 0.0
    %v265 = vmax.f32 %v247, 0.0
    %v266 = vld [vmem:[%s3] sm:$0xff]
    %v267 = vld [vmem:[%s3 + $0x8] sm:$0xff]
    %v268 = vld [vmem:[%s3 + $0x10] sm:$0xff]
    %v269 = vld [vmem:[%s3 + $0x18] sm:$0xff]
    %v270 = vld [vmem:[%s3 + $0x20] sm:$0xff]
    %v271 = vld [vmem:[%s3 + $0x28] sm:$0xff]
    %v272 = vld [vmem:[%s3 + $0x30] sm:$0xff]
    %v273 = vld [vmem:[%s3 + $0x38] sm:$0xff]
    %v274 = vld [vmem:[%s3 + $0x40] sm:$0xff]
    %v275 = vld [vmem:[%s3 + $0x48] sm:$0xff]
    %v276 = vld [vmem:[%s3 + $0x50] sm:$0xff]
    %v277 = vld [vmem:[%s3 + $0x58] sm:$0xff]
    %v278 = vld [vmem:[%s3 + $0x60] sm:$0xff]
    %v279 = vld [vmem:[%s3 + $0x68] sm:$0xff]
    %v280 = vld [vmem:[%s3 + $0x70] sm:$0xff]
    %v281 = vld [vmem:[%s3 + $0x78] sm:$0xff]
    %v282 = vld [vmem:[%s4] sm:$0x1]
    %v284 = vlaneseq
    %v285 = vshrl.u32 %v284, 7
    %v286 = vsub.s32 0, %v285
    %v287 = vrot.slane %v282, %v286
    %289 = vmatprep.subr.mxu0 0.0
    %290 = vmatpush1.msra.mxu0 %v266
    %291 = vmatprep.subr.mxu0 0.0
    %292 = vmatpush1.msra.mxu0 %v267
    %293 = vmatprep.subr.mxu0 0.0
    %294 = vmatpush1.msra.mxu0 %v268
    %295 = vmatprep.subr.mxu0 0.0
    %296 = vmatpush1.msra.mxu0 %v269
    %297 = vmatprep.subr.mxu0 0.0
    %298 = vmatpush1.msra.mxu0 %v270
    %299 = vmatprep.subr.mxu0 0.0
    %300 = vmatpush1.msra.mxu0 %v271
    %301 = vmatprep.subr.mxu0 0.0
    %302 = vmatpush1.msra.mxu0 %v272
    %303 = vmatprep.subr.mxu0 0.0
    %304 = vmatpush1.msra.mxu0 %v273
    %305 = vmatprep.subr.mxu0 0.0
    %306 = vmatpush1.msra.mxu0 %v274
    %307 = vmatprep.subr.mxu0 0.0
    %308 = vmatpush1.msra.mxu0 %v275
    %309 = vmatprep.subr.mxu0 0.0
    %310 = vmatpush1.msra.mxu0 %v276
    %311 = vmatprep.subr.mxu0 0.0
    %312 = vmatpush1.msra.mxu0 %v277
    %313 = vmatprep.subr.mxu0 0.0
    %314 = vmatpush1.msra.mxu0 %v278
    %315 = vmatprep.subr.mxu0 0.0
    %316 = vmatpush1.msra.mxu0 %v279
    %317 = vmatprep.subr.mxu0 0.0
    %318 = vmatpush1.msra.mxu0 %v280
    %319 = vmatprep.subr.mxu0 0.0
    %320 = vmatpush1.msra.mxu0 %v281
    %321 = vmatprep.subr.mxu0 0.0
    %322 = vmatpush1.msra.mxu0 0.0
    %323 = vmatprep.subr.mxu0 0.0
    %324 = vmatpush1.msra.mxu0 0.0
    %325 = vmatprep.subr.mxu0 0.0
    %326 = vmatpush1.msra.mxu0 0.0
    %327 = vmatprep.subr.mxu0 0.0
    %328 = vmatpush1.msra.mxu0 0.0
    %329 = vmatprep.subr.mxu0 0.0
    %330 = vmatpush1.msra.mxu0 0.0
    %331 = vmatprep.subr.mxu0 0.0
    %332 = vmatpush1.msra.mxu0 0.0
    %333 = vmatprep.subr.mxu0 0.0
    %334 = vmatpush1.msra.mxu0 0.0
    %335 = vmatprep.subr.mxu0 0.0
    %336 = vmatpush1.msra.mxu0 0.0
    %337 = vmatprep.subr.mxu0 0.0
    %338 = vmatpush1.msra.mxu0 0.0
    %339 = vmatprep.subr.mxu0 0.0
    %340 = vmatpush1.msra.mxu0 0.0
    %341 = vmatprep.subr.mxu0 0.0
    %342 = vmatpush1.msra.mxu0 0.0
    %343 = vmatprep.subr.mxu0 0.0
    %344 = vmatpush1.msra.mxu0 0.0
    %345 = vmatprep.subr.mxu0 0.0
    %346 = vmatpush1.msra.mxu0 0.0
    %347 = vmatprep.subr.mxu0 0.0
    %348 = vmatpush1.msra.mxu0 0.0
    %349 = vmatprep.subr.mxu0 0.0
    %350 = vmatpush1.msra.mxu0 0.0
    %351 = vmatprep.subr.mxu0 0.0
    %352 = vmatpush1.msra.mxu0 0.0
    %353 = vmatprep.mubr.f32.mxu0 0.0
    %354 = vmatmul.mubr.f32.gmra.mrb[0].mxu0 %v250
    %v355 = vpop.f32.mrb[0].mxu0
    %v356 = vadd.f32 %v287, %v355
    %v357 = vpop.f32.mrb[0].mxu0
    %358 = vmatprep.mubr.f32.mxu0 0.0
    %359 = vmatmul.mubr.f32.gmra.mrb[0].mxu0 %v251
    %v360 = vpop.f32.mrb[0].mxu0
    %v361 = vadd.f32 %v287, %v360
    %v362 = vpop.f32.mrb[0].mxu0
    %363 = vmatprep.mubr.f32.mxu0 0.0
    %364 = vmatmul.mubr.f32.gmra.mrb[0].mxu0 %v252
    %v365 = vpop.f32.mrb[0].mxu0
    %v366 = vadd.f32 %v287, %v365
    %v367 = vpop.f32.mrb[0].mxu0
    %368 = vmatprep.mubr.f32.mxu0 0.0
    %369 = vmatmul.mubr.f32.gmra.mrb[0].mxu0 %v253
    %v370 = vpop.f32.mrb[0].mxu0
    %v371 = vadd.f32 %v287, %v370
    %v372 = vpop.f32.mrb[0].mxu0
    %373 = vmatprep.mubr.f32.mxu0 0.0
    %374 = vmatmul.mubr.f32.gmra.mrb[0].mxu0 %v254
    %v375 = vpop.f32.mrb[0].mxu0
    %v376 = vadd.f32 %v287, %v375
    %v377 = vpop.f32.mrb[0].mxu0
    %378 = vmatprep.mubr.f32.mxu0 0.0
    %379 = vmatmul.mubr.f32.gmra.mrb[0].mxu0 %v255
    %v380 = vpop.f32.mrb[0].mxu0
    %v381 = vadd.f32 %v287, %v380
    %v382 = vpop.f32.mrb[0].mxu0
    %383 = vmatprep.mubr.f32.mxu0 0.0
    %384 = vmatmul.mubr.f32.gmra.mrb[0].mxu0 %v256
    %v385 = vpop.f32.mrb[0].mxu0
    %v386 = vadd.f32 %v287, %v385
    %v387 = vpop.f32.mrb[0].mxu0
    %388 = vmatprep.mubr.f32.mxu0 0.0
    %389 = vmatmul.mubr.f32.gmra.mrb[0].mxu0 %v257
    %v390 = vpop.f32.mrb[0].mxu0
    %v391 = vadd.f32 %v287, %v390
    %v392 = vpop.f32.mrb[0].mxu0
    %393 = vmatprep.mubr.f32.mxu0 0.0
    %394 = vmatmul.mubr.f32.gmra.mrb[0].mxu0 %v258
    %v395 = vpop.f32.mrb[0].mxu0
    %v396 = vadd.f32 %v287, %v395
    %v397 = vpop.f32.mrb[0].mxu0
    %398 = vmatprep.mubr.f32.mxu0 0.0
    %399 = vmatmul.mubr.f32.gmra.mrb[0].mxu0 %v259
    %v400 = vpop.f32.mrb[0].mxu0
    %v401 = vadd.f32 %v287, %v400
    %v402 = vpop.f32.mrb[0].mxu0
    %403 = vmatprep.mubr.f32.mxu0 0.0
    %404 = vmatmul.mubr.f32.gmra.mrb[0].mxu0 %v260
    %v405 = vpop.f32.mrb[0].mxu0
    %v406 = vadd.f32 %v287, %v405
    %v407 = vpop.f32.mrb[0].mxu0
    %408 = vmatprep.mubr.f32.mxu0 0.0
    %409 = vmatmul.mubr.f32.gmra.mrb[0].mxu0 %v261
    %v410 = vpop.f32.mrb[0].mxu0
    %v411 = vadd.f32 %v287, %v410
    %v412 = vpop.f32.mrb[0].mxu0
    %413 = vmatprep.mubr.f32.mxu0 0.0
    %414 = vmatmul.mubr.f32.gmra.mrb[0].mxu0 %v262
    %v415 = vpop.f32.mrb[0].mxu0
    %v416 = vadd.f32 %v287, %v415
    %v417 = vpop.f32.mrb[0].mxu0
    %418 = vmatprep.mubr.f32.mxu0 0.0
    %419 = vmatmul.mubr.f32.gmra.mrb[0].mxu0 %v263
    %v420 = vpop.f32.mrb[0].mxu0
    %v421 = vadd.f32 %v287, %v420
    %v422 = vpop.f32.mrb[0].mxu0
    %423 = vmatprep.mubr.f32.mxu0 0.0
    %424 = vmatmul.mubr.f32.gmra.mrb[0].mxu0 %v264
    %v425 = vpop.f32.mrb[0].mxu0
    %v426 = vadd.f32 %v287, %v425
    %v427 = vpop.f32.mrb[0].mxu0
    %428 = vmatprep.mubr.f32.mxu0 0.0
    %429 = vmatmul.mubr.f32.gmra.mrb[0].mxu0 %v265
    %v430 = vpop.f32.mrb[0].mxu0
    %v431 = vadd.f32 %v287, %v430
    %v432 = vpop.f32.mrb[0].mxu0
    %433 = vdwg.mxu0
    %v434 = vmax.f32 %v356, 0.0
    %v435 = vmax.f32 %v361, 0.0
    %v436 = vmax.f32 %v366, 0.0
    %v437 = vmax.f32 %v371, 0.0
    %v438 = vmax.f32 %v376, 0.0
    %v439 = vmax.f32 %v381, 0.0
    %v440 = vmax.f32 %v386, 0.0
    %v441 = vmax.f32 %v391, 0.0
    %v442 = vmax.f32 %v396, 0.0
    %v443 = vmax.f32 %v401, 0.0
    %v444 = vmax.f32 %v406, 0.0
    %v445 = vmax.f32 %v411, 0.0
    %v446 = vmax.f32 %v416, 0.0
    %v447 = vmax.f32 %v421, 0.0
    %v448 = vmax.f32 %v426, 0.0
    %v449 = vmax.f32 %v431, 0.0
    %v450 = vld [vmem:[%s5] sm:$0x1]
    %v452 = vlaneseq
    %v453 = vshrl.u32 %v452, 7
    %v454 = vsub.s32 0, %v453
    %v455 = vrot.slane %v450, %v454
    %v457 = vmul.f32 %v434, %v455
    %v458 = vmul.f32 %v435, %v455
    %v459 = vmul.f32 %v436, %v455
    %v460 = vmul.f32 %v437, %v455
    %v461 = vmul.f32 %v438, %v455
    %v462 = vmul.f32 %v439, %v455
    %v463 = vmul.f32 %v440, %v455
    %v464 = vmul.f32 %v441, %v455
    %v465 = vmul.f32 %v442, %v455
    %v466 = vmul.f32 %v443, %v455
    %v467 = vmul.f32 %v444, %v455
    %v468 = vmul.f32 %v445, %v455
    %v469 = vmul.f32 %v446, %v455
    %v470 = vmul.f32 %v447, %v455
    %v471 = vmul.f32 %v448, %v455
    %v472 = vmul.f32 %v449, %v455
    %vm473 = vcmask 523264
    %v474 = vsel %vm473, %v457, 0.0
    %475 = vadd.xlane.f32.xlu0 %v474
    %v476 = vpop.xlane.xlu0 %475
    %v477 = vsel %vm473, %v458, 0.0
    %478 = vadd.xlane.f32.xlu0 %v477
    %v479 = vpop.xlane.xlu0 %478
    %v480 = vsel %vm473, %v459, 0.0
    %481 = vadd.xlane.f32.xlu0 %v480
    %v482 = vpop.xlane.xlu0 %481
    %v483 = vsel %vm473, %v460, 0.0
    %484 = vadd.xlane.f32.xlu0 %v483
    %v485 = vpop.xlane.xlu0 %484
    %v486 = vsel %vm473, %v461, 0.0
    %487 = vadd.xlane.f32.xlu0 %v486
    %v488 = vpop.xlane.xlu0 %487
    %v489 = vsel %vm473, %v462, 0.0
    %490 = vadd.xlane.f32.xlu0 %v489
    %v491 = vpop.xlane.xlu0 %490
    %v492 = vsel %vm473, %v463, 0.0
    %493 = vadd.xlane.f32.xlu0 %v492
    %v494 = vpop.xlane.xlu0 %493
    %v495 = vsel %vm473, %v464, 0.0
    %496 = vadd.xlane.f32.xlu0 %v495
    %v497 = vpop.xlane.xlu0 %496
    %v498 = vsel %vm473, %v465, 0.0
    %499 = vadd.xlane.f32.xlu0 %v498
    %v500 = vpop.xlane.xlu0 %499
    %v501 = vsel %vm473, %v466, 0.0
    %502 = vadd.xlane.f32.xlu0 %v501
    %v503 = vpop.xlane.xlu0 %502
    %v504 = vsel %vm473, %v467, 0.0
    %505 = vadd.xlane.f32.xlu0 %v504
    %v506 = vpop.xlane.xlu0 %505
    %v507 = vsel %vm473, %v468, 0.0
    %508 = vadd.xlane.f32.xlu0 %v507
    %v509 = vpop.xlane.xlu0 %508
    %v510 = vsel %vm473, %v469, 0.0
    %511 = vadd.xlane.f32.xlu0 %v510
    %v512 = vpop.xlane.xlu0 %511
    %v513 = vsel %vm473, %v470, 0.0
    %514 = vadd.xlane.f32.xlu0 %v513
    %v515 = vpop.xlane.xlu0 %514
    %v516 = vsel %vm473, %v471, 0.0
    %517 = vadd.xlane.f32.xlu0 %v516
    %v518 = vpop.xlane.xlu0 %517
    %v519 = vsel %vm473, %v472, 0.0
    %520 = vadd.xlane.f32.xlu0 %v519
    %v521 = vpop.xlane.xlu0 %520
    %v522 = vld [vmem:[#allocation2] sm:$0x1]
    %v524 = vlaneseq
    %v525 = vshrl.u32 %v524, 7
    %v526 = vsub.s32 0, %v525
    %v527 = vrot.slane %v522, %v526
    %v529 = vadd.f32 %v476, %v527
    %v530 = vadd.f32 %v479, %v527
    %v531 = vadd.f32 %v482, %v527
    %v532 = vadd.f32 %v485, %v527
    %v533 = vadd.f32 %v488, %v527
    %v534 = vadd.f32 %v491, %v527
    %v535 = vadd.f32 %v494, %v527
    %v536 = vadd.f32 %v497, %v527
    %v537 = vadd.f32 %v500, %v527
    %v538 = vadd.f32 %v503, %v527
    %v539 = vadd.f32 %v506, %v527
    %v540 = vadd.f32 %v509, %v527
    %v541 = vadd.f32 %v512, %v527
    %v542 = vadd.f32 %v515, %v527
    %v543 = vadd.f32 %v518, %v527
    %v544 = vadd.f32 %v521, %v527
    %561 = vset.pattern.permute.xlu0 0
    %562 = vperm.xlu0 %561, %v529
    %v563 = vpop.permute.xlu0 %562
    %564 = vset.pattern.permute.xlu0 0
    %565 = vperm.xlu0 %564, %v530
    %v566 = vpop.permute.xlu0 %565
    %567 = vset.pattern.permute.xlu0 0
    %568 = vperm.xlu0 %567, %v531
    %v569 = vpop.permute.xlu0 %568
    %570 = vset.pattern.permute.xlu0 0
    %571 = vperm.xlu0 %570, %v532
    %v572 = vpop.permute.xlu0 %571
    %573 = vset.pattern.permute.xlu0 0
    %574 = vperm.xlu0 %573, %v533
    %v575 = vpop.permute.xlu0 %574
    %576 = vset.pattern.permute.xlu0 0
    %577 = vperm.xlu0 %576, %v534
    %v578 = vpop.permute.xlu0 %577
    %579 = vset.pattern.permute.xlu0 0
    %580 = vperm.xlu0 %579, %v535
    %v581 = vpop.permute.xlu0 %580
    %582 = vset.pattern.permute.xlu0 0
    %583 = vperm.xlu0 %582, %v536
    %v584 = vpop.permute.xlu0 %583
    %585 = vset.pattern.permute.xlu0 0
    %586 = vperm.xlu0 %585, %v537
    %v587 = vpop.permute.xlu0 %586
    %588 = vset.pattern.permute.xlu0 0
    %589 = vperm.xlu0 %588, %v538
    %v590 = vpop.permute.xlu0 %589
    %591 = vset.pattern.permute.xlu0 0
    %592 = vperm.xlu0 %591, %v539
    %v593 = vpop.permute.xlu0 %592
    %594 = vset.pattern.permute.xlu0 0
    %595 = vperm.xlu0 %594, %v540
    %v596 = vpop.permute.xlu0 %595
    %597 = vset.pattern.permute.xlu0 0
    %598 = vperm.xlu0 %597, %v541
    %v599 = vpop.permute.xlu0 %598
    %600 = vset.pattern.permute.xlu0 0
    %601 = vperm.xlu0 %600, %v542
    %v602 = vpop.permute.xlu0 %601
    %603 = vset.pattern.permute.xlu0 0
    %604 = vperm.xlu0 %603, %v543
    %v605 = vpop.permute.xlu0 %604
    %606 = vset.pattern.permute.xlu0 0
    %607 = vperm.xlu0 %606, %v544
    %v608 = vpop.permute.xlu0 %607
    %v609 = vlaneseq
    %v610 = vand.u32 %v609, 127
    %v611 = vlaneseq
    %v612 = vshrl.u32 %v611, 7
    %v613 = vsub.s32 %v610, %v612
    %v614 = vrot.slane %v563, %v613
    %v615 = vadd.s32 %v610, 4294967288
    %v616 = vlaneseq
    %v617 = vshrl.u32 %v616, 7
    %v618 = vsub.s32 %v615, %v617
    %v619 = vrot.slane %v566, %v618
    %vm620 = vcmask 130112
    %v621 = vsel %vm620, %v619, %v614
    %v622 = vadd.s32 %v610, 4294967280
    %v623 = vlaneseq
    %v624 = vshrl.u32 %v623, 7
    %v625 = vsub.s32 %v622, %v624
    %v626 = vrot.slane %v569, %v625
    %vm627 = vcmask 195712
    %v628 = vsel %vm627, %v626, %v621
    %v629 = vadd.s32 %v610, 4294967272
    %v630 = vlaneseq
    %v631 = vshrl.u32 %v630, 7
    %v632 = vsub.s32 %v629, %v631
    %v633 = vrot.slane %v572, %v632
    %vm634 = vcmask 261312
    %v635 = vsel %vm634, %v633, %v628
    %v636 = vadd.s32 %v610, 4294967264
    %v637 = vlaneseq
    %v638 = vshrl.u32 %v637, 7
    %v639 = vsub.s32 %v636, %v638
    %v640 = vrot.slane %v575, %v639
    %vm641 = vcmask 326912
    %v642 = vsel %vm641, %v640, %v635
    %v643 = vadd.s32 %v610, 4294967256
    %v644 = vlaneseq
    %v645 = vshrl.u32 %v644, 7
    %v646 = vsub.s32 %v643, %v645
    %v647 = vrot.slane %v578, %v646
    %vm648 = vcmask 392512
    %v649 = vsel %vm648, %v647, %v642
    %v650 = vadd.s32 %v610, 4294967248
    %v651 = vlaneseq
    %v652 = vshrl.u32 %v651, 7
    %v653 = vsub.s32 %v650, %v652
    %v654 = vrot.slane %v581, %v653
    %vm655 = vcmask 458112
    %v656 = vsel %vm655, %v654, %v649
    %v657 = vadd.s32 %v610, 4294967240
    %v658 = vlaneseq
    %v659 = vshrl.u32 %v658, 7
    %v660 = vsub.s32 %v657, %v659
    %v661 = vrot.slane %v584, %v660
    %vm662 = vcmask 523712
    %v663 = vsel %vm662, %v661, %v656
    %v664 = vadd.s32 %v610, 4294967232
    %v665 = vlaneseq
    %v666 = vshrl.u32 %v665, 7
    %v667 = vsub.s32 %v664, %v666
    %v668 = vrot.slane %v587, %v667
    %vm669 = vcmask 589312
    %v670 = vsel %vm669, %v668, %v663
    %v671 = vadd.s32 %v610, 4294967224
    %v672 = vlaneseq
    %v673 = vshrl.u32 %v672, 7
    %v674 = vsub.s32 %v671, %v673
    %v675 = vrot.slane %v590, %v674
    %vm676 = vcmask 654912
    %v677 = vsel %vm676, %v675, %v670
    %v678 = vadd.s32 %v610, 4294967216
    %v679 = vlaneseq
    %v680 = vshrl.u32 %v679, 7
    %v681 = vsub.s32 %v678, %v680
    %v682 = vrot.slane %v593, %v681
    %vm683 = vcmask 720512
    %v684 = vsel %vm683, %v682, %v677
    %v685 = vadd.s32 %v610, 4294967208
    %v686 = vlaneseq
    %v687 = vshrl.u32 %v686, 7
    %v688 = vsub.s32 %v685, %v687
    %v689 = vrot.slane %v596, %v688
    %vm690 = vcmask 786112
    %v691 = vsel %vm690, %v689, %v684
    %v692 = vadd.s32 %v610, 4294967200
    %v693 = vlaneseq
    %v694 = vshrl.u32 %v693, 7
    %v695 = vsub.s32 %v692, %v694
    %v696 = vrot.slane %v599, %v695
    %vm697 = vcmask 851712
    %v698 = vsel %vm697, %v696, %v691
    %v699 = vadd.s32 %v610, 4294967192
    %v700 = vlaneseq
    %v701 = vshrl.u32 %v700, 7
    %v702 = vsub.s32 %v699, %v701
    %v703 = vrot.slane %v602, %v702
    %vm704 = vcmask 917312
    %v705 = vsel %vm704, %v703, %v698
    %v706 = vadd.s32 %v610, 4294967184
    %v707 = vlaneseq
    %v708 = vshrl.u32 %v707, 7
    %v709 = vsub.s32 %v706, %v708
    %v710 = vrot.slane %v605, %v709
    %vm711 = vcmask 982912
    %v712 = vsel %vm711, %v710, %v705
    %v713 = vadd.s32 %v610, 4294967176
    %v714 = vlaneseq
    %v715 = vshrl.u32 %v714, 7
    %v716 = vsub.s32 %v713, %v715
    %v717 = vrot.slane %v608, %v716
    %vm718 = vcmask 1048512
    %v719 = vsel %vm718, %v717, %v712
    %721 = vst [vmem:[#allocation3] sm:$0x1] %v719
    // Predicated region
    $region30: #{tpu_custom_call.1} parent=1 // pred_check
      _
    $region31: #{tpu_custom_call.1} parent=1 // pred_check_branch
      %723 = sbr.rel (0) target = $region33
    $region32: #{tpu_custom_call.1} parent=1 // pred_region
      %s725 = ssub.s32 16, 16
      %726 = vsyncadd [#allocation4], %s725
      %s728 = sshll.u32 [#allocation3], 4
      %s729 = int_to_ptr.vmem [resolvable:$true] %s728
      %731 = dma.vmem_to_hbm [thread:$0]  %s729, 16, %s7, [#allocation4]
    $region33: #{tpu_custom_call.1} parent=1 // pred_fallthru
      _
    // Predicated region
    $region34: #{tpu_custom_call.1} parent=1 // pred_check
      _
    $region35: #{tpu_custom_call.1} parent=1 // pred_check_branch
      %733 = sbr.rel (0) target = $region37
    $region36: #{tpu_custom_call.1} parent=1 // pred_region
      %734 = dma.done [#allocation4], 16
    $region37: #{tpu_custom_call.1} parent=1 // pred_fallthru
      _
    %735 = vsyncpa [#allocation4], 1

</llo_original>
